<compile_context>
chip_gen: v7x
topology: tpu7x:2x2x1
jax: 0.10.0
libtpu: 0.0.40
codegen_flags: <defaults>
</compile_context>

<pallas_src>
import math

import jax
import jax.numpy as jnp
from jax.experimental import pallas as pl
from jax.experimental.pallas import tpu as pltpu

SELU_ALPHA = 1.6732632423543772848170429916717
SELU_SCALE = 1.0507009873554804934193349852946

LAYER_SIZES = [256, 128, 64, 32, 1]


def _selu(x):
    # exp only on the non-positive branch so the unselected lane stays finite.
    return SELU_SCALE * jnp.where(
        x > 0, x, SELU_ALPHA * (jnp.exp(jnp.minimum(x, 0.0)) - 1.0))


def _round_up(n, m):
    return ((n + m - 1) // m) * m


def mlp_kernel(x_ref,
               w0_ref, b0_ref,
               w1_ref, b1_ref,
               w2_ref, b2_ref,
               w3_ref, b3_ref,
               o_ref):
    """One batch tile: 3 MXU matmuls (bf16 in, f32 acc) + VPU final layer."""
    # Layer 0: (TB,256) @ (256,128)
    h = jnp.dot(x_ref[...], w0_ref[...], preferred_element_type=jnp.float32)
    h = _selu(h + b0_ref[...])
    # TODO(synk): training-mode dropout (p=0.2) after layers 0/1 not implemented
    # (eval-mode forward -> identity), matching nn.Dropout at inference.

    # Layer 1: (TB,128) @ (128,64)
    h = jnp.dot(h.astype(w1_ref.dtype), w1_ref[...],
                preferred_element_type=jnp.float32)
    h = _selu(h + b1_ref[...])

    # Layer 2: (TB,64) @ (64,32)
    h = jnp.dot(h.astype(w2_ref.dtype), w2_ref[...],
                preferred_element_type=jnp.float32)
    h = _selu(h + b2_ref[...])

    # Layer 3 (32 -> 1): an N=1 MXU matmul wastes the array; do it on VPU/XLU:
    # elementwise multiply by the f32 weight row then reduce over lanes.
    z = jnp.sum(h * w3_ref[...], axis=-1, keepdims=True)     # (TB, 1)
    z = _selu(z + b3_ref[0, 0])                               # scalar bias (SMEM)

    # TODO(synk): output stays a (TB,1) column (masked stores); a lane-dense
    # (1,TB) slab would need a column->row relayout, not worth it at ~2KB/step
    # since the kernel is bound by the (TB,256) input stream.
    o_ref[...] = z.astype(o_ref.dtype)


def init_params(key, layer_sizes=LAYER_SIZES):
    """Deterministic init mirroring torch.nn.Linear defaults."""
    params = []
    for i in range(len(layer_sizes) - 1):
        fan_in, fan_out = layer_sizes[i], layer_sizes[i + 1]
        key, kw, kb = jax.random.split(key, 3)
        bound = 1.0 / math.sqrt(fan_in)
        # stored as (in, out) == transposed torch weight
        w = jax.random.uniform(kw, (fan_in, fan_out), jnp.float32, -bound, bound)
        b = jax.random.uniform(kb, (1, fan_out), jnp.float32, -bound, bound)
        params.append((w, b))
    return params


def mlp_forward(x, params, *, block_rows=512, use_bf16=True):
    batch, in_dim = x.shape
    (w0, b0), (w1, b1), (w2, b2), (w3, b3) = params
    assert in_dim == w0.shape[0]
    out_dim = w3.shape[1]

    # Batch tile: 512 rows (>= ~85% of HBM roofline per the tile sweep) keeps
    # padding waste bounded; for small batches shrink to a multiple of 8
    # sublanes so a tiny batch is a single step.
    tb = min(block_rows, _round_up(batch, 8))
    grid = pl.cdiv(batch, tb)
    padded = grid * tb
    if padded != batch:
        x = jnp.pad(x, ((0, padded - batch), (0, 0)))

    mxu_dtype = jnp.bfloat16 if use_bf16 else jnp.float32
    w3_row = w3.T.astype(jnp.float32)  # (1, 32): lane-major f32 row for VPU layer
    b3_s = b3.reshape(1, 1)            # scalar bias -> SMEM

    args = [
        x.astype(mxu_dtype),
        w0.astype(mxu_dtype), b0,
        w1.astype(mxu_dtype), b1,
        w2.astype(mxu_dtype), b2,
        w3_row, b3_s,
    ]

    def resident(shape):
        # Constant block index across the grid -> fetched once, stays in VMEM.
        return pl.BlockSpec(shape, lambda i: (0, 0))

    in_specs = [
        pl.BlockSpec((tb, in_dim), lambda i: (i, 0)),          # x: streamed
        resident(w0.shape), resident(b0.shape),
        resident(w1.shape), resident(b1.shape),
        resident(w2.shape), resident(b2.shape),
        resident(w3_row.shape),
        pl.BlockSpec(memory_space=pltpu.MemorySpace.SMEM),     # b3 scalar
    ]

    out = pl.pallas_call(
        mlp_kernel,
        out_shape=jax.ShapeDtypeStruct((padded, out_dim), jnp.float32),
        grid=(grid,),
        in_specs=in_specs,
        out_specs=pl.BlockSpec((tb, out_dim), lambda i: (i, 0)),
        compiler_params=pltpu.CompilerParams(
            dimension_semantics=("parallel",)),
    )(*args)
    return out[:batch]


def mlp_reference_f32(x, params):
    """Pure f32 JAX reference (matches the PyTorch eval-mode forward)."""
    h = x
    for w, b in params:
        h = _selu(jnp.dot(h, w, preferred_element_type=jnp.float32) + b)
    return h


def mlp_reference_matched(x, params, mxu_dtype):
    """Reference with the same bf16-operand / f32-accumulate strategy as the kernel."""
    (w0, b0), (w1, b1), (w2, b2), (w3, b3) = params
    h = jnp.dot(x.astype(mxu_dtype), w0.astype(mxu_dtype),
                preferred_element_type=jnp.float32)
    h = _selu(h + b0)
    h = jnp.dot(h.astype(mxu_dtype), w1.astype(mxu_dtype),
                preferred_element_type=jnp.float32)
    h = _selu(h + b1)
    h = jnp.dot(h.astype(mxu_dtype), w2.astype(mxu_dtype),
                preferred_element_type=jnp.float32)
    h = _selu(h + b2)
    w3_row = w3.T.astype(jnp.float32)                          # (1, 32)
    z = jnp.sum(h * w3_row, axis=-1, keepdims=True) + b3
    return _selu(z)


if __name__ == "__main__":
    key = jax.random.PRNGKey(0)
    key, kx = jax.random.split(key)

    # Small demo: batch=20 with 8-row tiles exercises grid>1 + padding + slice.
    batch = 20
    x = jax.random.normal(kx, (batch, LAYER_SIZES[0]), dtype=jnp.float32)
    params = init_params(jax.random.PRNGKey(0))

    out = mlp_forward(x, params, block_rows=8, use_bf16=True)
    out = jax.block_until_ready(out)
    assert out.shape == (batch, 1), out.shape

    # Tight check vs. a reference using the same bf16-operand strategy.
    ref_matched = mlp_reference_matched(x, params, jnp.bfloat16)
    assert jnp.allclose(out, ref_matched, atol=1e-3, rtol=1e-3), (
        float(jnp.max(jnp.abs(out - ref_matched))))

    # Loose check vs. the full-f32 PyTorch-equivalent forward.
    ref_f32 = mlp_reference_f32(x, params)
    assert jnp.allclose(out, ref_f32, atol=2e-2, rtol=5e-2), (
        float(jnp.max(jnp.abs(out - ref_f32))))

    print("KERNEL_OK")
</pallas_src>

<mosaic_0001>
module attributes {stable_mosaic.version = 11 : i64} {
  func.func @mlp_kernel(%arg0: i32, %arg1: memref<8x256xbf16, #tpu.memory_space<vmem>>, %arg2: memref<256x128xbf16, #tpu.memory_space<vmem>>, %arg3: memref<1x128xf32, #tpu.memory_space<vmem>>, %arg4: memref<128x64xbf16, #tpu.memory_space<vmem>>, %arg5: memref<1x64xf32, #tpu.memory_space<vmem>>, %arg6: memref<64x32xbf16, #tpu.memory_space<vmem>>, %arg7: memref<1x32xf32, #tpu.memory_space<vmem>>, %arg8: memref<1x32xf32, #tpu.memory_space<vmem>>, %arg9: memref<1x1xf32, #tpu.memory_space<smem>>, %arg10: memref<8x1xf32, #tpu.memory_space<vmem>>) attributes {dimension_semantics = [#tpu.dimension_semantics<parallel>], iteration_bounds = array<i64: 3>, scalar_prefetch = 0 : i64, scratch_operands = 0 : i64, tpu.core_type = #tpu.core_type<tc>, window_params = [{transform_indices = @transform_0, window_bounds = array<i64: 8, 256>}, {pipeline_mode = #tpu.pipeline_mode<synchronous>, transform_indices = @transform_1, window_bounds = array<i64: 256, 128>}, {pipeline_mode = #tpu.pipeline_mode<synchronous>, transform_indices = @transform_2, window_bounds = array<i64: 1, 128>}, {pipeline_mode = #tpu.pipeline_mode<synchronous>, transform_indices = @transform_3, window_bounds = array<i64: 128, 64>}, {pipeline_mode = #tpu.pipeline_mode<synchronous>, transform_indices = @transform_4, window_bounds = array<i64: 1, 64>}, {pipeline_mode = #tpu.pipeline_mode<synchronous>, transform_indices = @transform_5, window_bounds = array<i64: 64, 32>}, {pipeline_mode = #tpu.pipeline_mode<synchronous>, transform_indices = @transform_6, window_bounds = array<i64: 1, 32>}, {pipeline_mode = #tpu.pipeline_mode<synchronous>, transform_indices = @transform_7, window_bounds = array<i64: 1, 32>}, {transform_indices = @transform_8, window_bounds = array<i64: 1, 1>}, {transform_indices = @transform_9, window_bounds = array<i64: 8, 1>}]} {
    %c0 = arith.constant 0 : index
    %c0_0 = arith.constant 0 : index
    %0 = vector.load %arg1[%c0, %c0_0] : memref<8x256xbf16, #tpu.memory_space<vmem>>, vector<8x256xbf16>
    %c0_1 = arith.constant 0 : index
    %c0_2 = arith.constant 0 : index
    %1 = vector.load %arg2[%c0_1, %c0_2] : memref<256x128xbf16, #tpu.memory_space<vmem>>, vector<256x128xbf16>
    %cst = arith.constant dense<0.000000e+00> : vector<8x128xf32>
    %2 = tpu.matmul %0, %1, %cst {dimension_numbers = #tpu.dot_dimension_numbers<[1], [0], [0], [1], [0, 0, 1, 1], [], []>} : vector<8x256xbf16>, vector<256x128xbf16>, vector<8x128xf32> -> vector<8x128xf32>
    %c0_3 = arith.constant 0 : index
    %c0_4 = arith.constant 0 : index
    %3 = vector.load %arg3[%c0_3, %c0_4] : memref<1x128xf32, #tpu.memory_space<vmem>>, vector<1x128xf32>
    %4 = vector.broadcast %3 : vector<1x128xf32> to vector<8x128xf32>
    %5 = arith.addf %2, %4 : vector<8x128xf32>
    %cst_5 = arith.constant 0.000000e+00 : f32
    %6 = vector.broadcast %cst_5 : f32 to vector<8x128xf32>
    %7 = arith.cmpf ogt, %5, %6 : vector<8x128xf32>
    %cst_6 = arith.constant 0.000000e+00 : f32
    %8 = vector.broadcast %cst_6 : f32 to vector<8x128xf32>
    %9 = arith.minimumf %5, %8 : vector<8x128xf32>
    %10 = math.exp %9 : vector<8x128xf32>
    %cst_7 = arith.constant 1.000000e+00 : f32
    %11 = vector.broadcast %cst_7 : f32 to vector<8x128xf32>
    %12 = arith.subf %10, %11 : vector<8x128xf32>
    %cst_8 = arith.constant 1.67326319 : f32
    %13 = vector.broadcast %cst_8 : f32 to vector<8x128xf32>
    %14 = arith.mulf %13, %12 : vector<8x128xf32>
    %15 = arith.select %7, %5, %14 : vector<8x128xi1>, vector<8x128xf32>
    %cst_9 = arith.constant 1.05070102 : f32
    %16 = vector.broadcast %cst_9 : f32 to vector<8x128xf32>
    %17 = arith.mulf %16, %15 : vector<8x128xf32>
    %18 = arith.truncf %17 : vector<8x128xf32> to vector<8x128xbf16>
    %c0_10 = arith.constant 0 : index
    %c0_11 = arith.constant 0 : index
    %19 = vector.load %arg4[%c0_10, %c0_11] : memref<128x64xbf16, #tpu.memory_space<vmem>>, vector<128x64xbf16>
    %cst_12 = arith.constant dense<0.000000e+00> : vector<8x64xf32>
    %20 = tpu.matmul %18, %19, %cst_12 {dimension_numbers = #tpu.dot_dimension_numbers<[1], [0], [0], [1], [0, 0, 1, 1], [], []>} : vector<8x128xbf16>, vector<128x64xbf16>, vector<8x64xf32> -> vector<8x64xf32>
    %c0_13 = arith.constant 0 : index
    %c0_14 = arith.constant 0 : index
    %21 = vector.load %arg5[%c0_13, %c0_14] : memref<1x64xf32, #tpu.memory_space<vmem>>, vector<1x64xf32>
    %22 = vector.broadcast %21 : vector<1x64xf32> to vector<8x64xf32>
    %23 = arith.addf %20, %22 : vector<8x64xf32>
    %cst_15 = arith.constant 0.000000e+00 : f32
    %24 = vector.broadcast %cst_15 : f32 to vector<8x64xf32>
    %25 = arith.cmpf ogt, %23, %24 : vector<8x64xf32>
    %cst_16 = arith.constant 0.000000e+00 : f32
    %26 = vector.broadcast %cst_16 : f32 to vector<8x64xf32>
    %27 = arith.minimumf %23, %26 : vector<8x64xf32>
    %28 = math.exp %27 : vector<8x64xf32>
    %cst_17 = arith.constant 1.000000e+00 : f32
    %29 = vector.broadcast %cst_17 : f32 to vector<8x64xf32>
    %30 = arith.subf %28, %29 : vector<8x64xf32>
    %cst_18 = arith.constant 1.67326319 : f32
    %31 = vector.broadcast %cst_18 : f32 to vector<8x64xf32>
    %32 = arith.mulf %31, %30 : vector<8x64xf32>
    %33 = arith.select %25, %23, %32 : vector<8x64xi1>, vector<8x64xf32>
    %cst_19 = arith.constant 1.05070102 : f32
    %34 = vector.broadcast %cst_19 : f32 to vector<8x64xf32>
    %35 = arith.mulf %34, %33 : vector<8x64xf32>
    %36 = arith.truncf %35 : vector<8x64xf32> to vector<8x64xbf16>
    %c0_20 = arith.constant 0 : index
    %c0_21 = arith.constant 0 : index
    %37 = vector.load %arg6[%c0_20, %c0_21] : memref<64x32xbf16, #tpu.memory_space<vmem>>, vector<64x32xbf16>
    %cst_22 = arith.constant dense<0.000000e+00> : vector<8x32xf32>
    %38 = tpu.matmul %36, %37, %cst_22 {dimension_numbers = #tpu.dot_dimension_numbers<[1], [0], [0], [1], [0, 0, 1, 1], [], []>} : vector<8x64xbf16>, vector<64x32xbf16>, vector<8x32xf32> -> vector<8x32xf32>
    %c0_23 = arith.constant 0 : index
    %c0_24 = arith.constant 0 : index
    %39 = vector.load %arg7[%c0_23, %c0_24] : memref<1x32xf32, #tpu.memory_space<vmem>>, vector<1x32xf32>
    %40 = vector.broadcast %39 : vector<1x32xf32> to vector<8x32xf32>
    %41 = arith.addf %38, %40 : vector<8x32xf32>
    %cst_25 = arith.constant 0.000000e+00 : f32
    %42 = vector.broadcast %cst_25 : f32 to vector<8x32xf32>
    %43 = arith.cmpf ogt, %41, %42 : vector<8x32xf32>
    %cst_26 = arith.constant 0.000000e+00 : f32
    %44 = vector.broadcast %cst_26 : f32 to vector<8x32xf32>
    %45 = arith.minimumf %41, %44 : vector<8x32xf32>
    %46 = math.exp %45 : vector<8x32xf32>
    %cst_27 = arith.constant 1.000000e+00 : f32
    %47 = vector.broadcast %cst_27 : f32 to vector<8x32xf32>
    %48 = arith.subf %46, %47 : vector<8x32xf32>
    %cst_28 = arith.constant 1.67326319 : f32
    %49 = vector.broadcast %cst_28 : f32 to vector<8x32xf32>
    %50 = arith.mulf %49, %48 : vector<8x32xf32>
    %51 = arith.select %43, %41, %50 : vector<8x32xi1>, vector<8x32xf32>
    %cst_29 = arith.constant 1.05070102 : f32
    %52 = vector.broadcast %cst_29 : f32 to vector<8x32xf32>
    %53 = arith.mulf %52, %51 : vector<8x32xf32>
    %c0_30 = arith.constant 0 : index
    %c0_31 = arith.constant 0 : index
    %54 = vector.load %arg8[%c0_30, %c0_31] : memref<1x32xf32, #tpu.memory_space<vmem>>, vector<1x32xf32>
    %55 = vector.broadcast %54 : vector<1x32xf32> to vector<8x32xf32>
    %56 = arith.mulf %53, %55 : vector<8x32xf32>
    %cst_32 = arith.constant dense<0.000000e+00> : vector<8xf32>
    %57 = vector.multi_reduction <add>, %56, %cst_32 [1] : vector<8x32xf32> to vector<8xf32>
    %58 = vector.shape_cast %57 : vector<8xf32> to vector<8x1xf32>
    %c0_33 = arith.constant 0 : index
    %c0_34 = arith.constant 0 : index
    %59 = memref.load %arg9[%c0_33, %c0_34] : memref<1x1xf32, #tpu.memory_space<smem>>
    %60 = vector.broadcast %59 : f32 to vector<8x1xf32>
    %61 = arith.addf %58, %60 : vector<8x1xf32>
    %cst_35 = arith.constant 0.000000e+00 : f32
    %62 = vector.broadcast %cst_35 : f32 to vector<8x1xf32>
    %63 = arith.cmpf ogt, %61, %62 : vector<8x1xf32>
    %cst_36 = arith.constant 0.000000e+00 : f32
    %64 = vector.broadcast %cst_36 : f32 to vector<8x1xf32>
    %65 = arith.minimumf %61, %64 : vector<8x1xf32>
    %66 = math.exp %65 : vector<8x1xf32>
    %cst_37 = arith.constant 1.000000e+00 : f32
    %67 = vector.broadcast %cst_37 : f32 to vector<8x1xf32>
    %68 = arith.subf %66, %67 : vector<8x1xf32>
    %cst_38 = arith.constant 1.67326319 : f32
    %69 = vector.broadcast %cst_38 : f32 to vector<8x1xf32>
    %70 = arith.mulf %69, %68 : vector<8x1xf32>
    %71 = arith.select %63, %61, %70 : vector<8x1xi1>, vector<8x1xf32>
    %cst_39 = arith.constant 1.05070102 : f32
    %72 = vector.broadcast %cst_39 : f32 to vector<8x1xf32>
    %73 = arith.mulf %72, %71 : vector<8x1xf32>
    %c0_40 = arith.constant 0 : index
    %c0_41 = arith.constant 0 : index
    %74 = vector.load %arg10[%c0_40, %c0_41] : memref<8x1xf32, #tpu.memory_space<vmem>>, vector<8x1xf32>
    tpu.vector_store %arg10[%c0_40, %c0_41], %73 {strides = array<i32>} : memref<8x1xf32, #tpu.memory_space<vmem>>, vector<8x1xf32>,
    return
  }
  func.func @transform_0(%arg0: i32) -> (i32, i32) {
    %c0_i32 = arith.constant 0 : i32
    %c0_i32_0 = arith.constant 0 : i32
    return %arg0, %c0_i32 : i32, i32
  }
  func.func @transform_1(%arg0: i32) -> (i32, i32) {
    %c0_i32 = arith.constant 0 : i32
    %c0_i32_0 = arith.constant 0 : i32
    %c0_i32_1 = arith.constant 0 : i32
    return %c0_i32, %c0_i32_0 : i32, i32
  }
  func.func @transform_2(%arg0: i32) -> (i32, i32) {
    %c0_i32 = arith.constant 0 : i32
    %c0_i32_0 = arith.constant 0 : i32
    %c0_i32_1 = arith.constant 0 : i32
    return %c0_i32, %c0_i32_0 : i32, i32
  }
  func.func @transform_3(%arg0: i32) -> (i32, i32) {
    %c0_i32 = arith.constant 0 : i32
    %c0_i32_0 = arith.constant 0 : i32
    %c0_i32_1 = arith.constant 0 : i32
    return %c0_i32, %c0_i32_0 : i32, i32
  }
  func.func @transform_4(%arg0: i32) -> (i32, i32) {
    %c0_i32 = arith.constant 0 : i32
    %c0_i32_0 = arith.constant 0 : i32
    %c0_i32_1 = arith.constant 0 : i32
    return %c0_i32, %c0_i32_0 : i32, i32
  }
  func.func @transform_5(%arg0: i32) -> (i32, i32) {
    %c0_i32 = arith.constant 0 : i32
    %c0_i32_0 = arith.constant 0 : i32
    %c0_i32_1 = arith.constant 0 : i32
    return %c0_i32, %c0_i32_0 : i32, i32
  }
  func.func @transform_6(%arg0: i32) -> (i32, i32) {
    %c0_i32 = arith.constant 0 : i32
    %c0_i32_0 = arith.constant 0 : i32
    %c0_i32_1 = arith.constant 0 : i32
    return %c0_i32, %c0_i32_0 : i32, i32
  }
  func.func @transform_7(%arg0: i32) -> (i32, i32) {
    %c0_i32 = arith.constant 0 : i32
    %c0_i32_0 = arith.constant 0 : i32
    %c0_i32_1 = arith.constant 0 : i32
    return %c0_i32, %c0_i32_0 : i32, i32
  }
  func.func @transform_8(%arg0: i32) -> (i32, i32) {
    %c0_i32 = arith.constant 0 : i32
    %c0_i32_0 = arith.constant 0 : i32
    %c0_i32_1 = arith.constant 0 : i32
    return %c0_i32, %c0_i32_0 : i32, i32
  }
  func.func @transform_9(%arg0: i32) -> (i32, i32) {
    %c0_i32 = arith.constant 0 : i32
    %c0_i32_0 = arith.constant 0 : i32
    return %arg0, %c0_i32 : i32, i32
  }
}

</mosaic_0001>

<llo_original>
// kernel: tpu_custom_call.1
$region0: #{tpu_custom_call.1}
  #allocation0 [shape = 'u32[]', space=smem, size = 0x4, offset = 0x4, fixed_abs, tag = 'smem constant byte address 0x4 - core index']
  #allocation1 [shape = 'u32[144,128]{1,0:T(1,128)}', space=vmem, size = 0x12000, scoped, tag = 'internal scratch']
  #allocation2 [shape = 'f32[1,1]{1,0:T(1,128)S(6)}', space=smem, size = 0x200, scoped, tag = 'scoped memory for tpu_custom_call.1']
  %s0 = inlined_call_operand.hbm [shape: bf16[24,256], index: 0, kind: input, shape index: {}]
  %s1 = inlined_call_operand.vmem [shape: bf16[256,128], index: 1, kind: input, shape index: {}]
  %s2 = inlined_call_operand.vmem [shape: f32[1,128], index: 2, kind: input, shape index: {}]
  %s3 = inlined_call_operand.vmem [shape: bf16[128,64], index: 3, kind: input, shape index: {}]
  %s4 = inlined_call_operand.vmem [shape: f32[1,64], index: 4, kind: input, shape index: {}]
  %s5 = inlined_call_operand.vmem [shape: bf16[64,32], index: 5, kind: input, shape index: {}]
  %s6 = inlined_call_operand.vmem [shape: f32[1,32], index: 6, kind: input, shape index: {}]
  %s7 = inlined_call_operand.vmem [shape: f32[1,32], index: 7, kind: input, shape index: {}]
  %s8 = inlined_call_operand.<no memory space> [shape: f32[1,1], index: 8, kind: input, shape index: {}]
  %s9 = inlined_call_operand.vmem [shape: f32[24,1], index: 9, kind: output, shape index: {}]
  %s10 = sld [smem:[#allocation0]]
  $region73: #{tpu_custom_call.1} parent=0
    _
  %s12 = ssub.s32 1, %s10
  %s13 = scalar_select 0, %s12, %s10
  %14 = sst [smem:[#allocation2]] %s8
  $region1: #{tpu_custom_call.1} parent=0
    #allocation3 [shape = 'u8[8192]{0}', space=vmem, size = 0x2000, scoped, tag = 'input window, operand 0']
    #allocation4 [shape = 's32[2]{0}', space=sflag, size = 0x8, scoped, tag = 'scoped memory for tpu_custom_call.1']
    %15 = vsyncpa [#allocation4], 0
    %s16 = scalar_lea.sflag [#allocation4], 1
    %17 = vsyncpa %s16, 0
    loop: start=0, step=1, limit=5
    $region2: #{tpu_custom_call.1} parent=1 // loop_pre_header
      _
    $region3: #{tpu_custom_call.1} parent=1 // loop_header
      %s19 = sphi 0, %s23
      %p20 = scmp.ge.s32.totalorder %s19, 5
      %s29 = sphi 0, %s31
      %s32 = sphi 0, %s29
      %s33 = sphi 0, %s32
      %s49 = sphi 0, %s33
      %s53 = sphi 0, %s53
      %s55 = sphi 0, %s53
      %s56 = sphi 0, %s55
      %s70 = sphi 0, %s56
      %s74 = sphi 0, %s74
      %s76 = sphi 0, %s74
      %s77 = sphi 0, %s76
      %s91 = sphi 0, %s77
      %s95 = sphi 0, %s95
      %s97 = sphi 0, %s95
      %s98 = sphi 0, %s97
      %s112 = sphi 0, %s98
      %s116 = sphi 0, %s116
      %s118 = sphi 0, %s116
      %s119 = sphi 0, %s118
      %s133 = sphi 0, %s119
      %s137 = sphi 0, %s137
      %s139 = sphi 0, %s137
      %s140 = sphi 0, %s139
      %s154 = sphi 0, %s140
      %s158 = sphi 0, %s158
      %s160 = sphi 0, %s158
      %s161 = sphi 0, %s160
      %s175 = sphi 0, %s161
      %s179 = sphi 0, %s179
      %s181 = sphi 0, %s179
      %s182 = sphi 0, %s181
      %s196 = sphi 0, %s182
      %s200 = sphi 0, %s200
      %s202 = sphi 0, %s200
      %s203 = sphi 0, %s202
      %s217 = sphi 0, %s203
      %s223 = sphi 0, %s225
      %s226 = sphi 0, %s223
      %s227 = sphi 0, %s226
      %s243 = sphi 0, %s227
    $region4: #{tpu_custom_call.1} parent=1 // loop_header_branch
      %22 = sbr.rel (%p20) target = $region8
    $region5: #{tpu_custom_call.1} parent=1 // loop_body
      %s24 = ssub.s32 %s19, 1
      %s25 = ssub.s32 %s19, 2
      %s26 = sadd.s32 %s19, 1
      %s27 = ssub.s32 %s19, %s26
      %p28 = scmp.eq.s32.totalorder %s27, 0
      %s30 = sadd.s32 %s29, 1
      %s31 = scalar_select %p28, %s29, %s30
      %p34 = pneg %p28
      %p35 = scmp.eq.s32.totalorder %s19, 2
      %p36 = por %p34, %p35
      %p37 = scmp.ne.s32.totalorder %s29, %s32
      %p38 = scmp.eq.s32.totalorder %s19, 0
      %p39 = por %p37, %p38
      %p40 = scmp.ne.s32.totalorder %s29, %s32
      %p41 = scmp.eq.s32.totalorder %s24, 2
      %p42 = por %p40, %p41
      %p43 = scmp.ne.s32.totalorder %s32, %s33
      %p44 = scmp.eq.s32.totalorder %s24, 0
      %p45 = por %p43, %p44
      %p46 = scmp.ne.s32.totalorder %s32, %s33
      %p47 = scmp.eq.s32.totalorder %s25, 2
      %p48 = por %p46, %p47
      %p50 = scmp.ne.s32.totalorder %s33, %s49
      %p51 = scmp.eq.s32.totalorder %s25, 0
      %p52 = por %p50, %p51
      %s54 = sadd.s32 %s53, 1
      %p57 = scmp.eq.s32.totalorder %s19, 2
      %p58 = scmp.ne.s32.totalorder %s53, %s55
      %p59 = scmp.eq.s32.totalorder %s19, 0
      %p60 = por %p58, %p59
      %p61 = scmp.ne.s32.totalorder %s53, %s55
      %p62 = scmp.eq.s32.totalorder %s24, 2
      %p63 = por %p61, %p62
      %p64 = scmp.ne.s32.totalorder %s55, %s56
      %p65 = scmp.eq.s32.totalorder %s24, 0
      %p66 = por %p64, %p65
      %p67 = scmp.ne.s32.totalorder %s55, %s56
      %p68 = scmp.eq.s32.totalorder %s25, 2
      %p69 = por %p67, %p68
      %p71 = scmp.ne.s32.totalorder %s56, %s70
      %p72 = scmp.eq.s32.totalorder %s25, 0
      %p73 = por %p71, %p72
      %s75 = sadd.s32 %s74, 1
      %p78 = scmp.eq.s32.totalorder %s19, 2
      %p79 = scmp.ne.s32.totalorder %s74, %s76
      %p80 = scmp.eq.s32.totalorder %s19, 0
      %p81 = por %p79, %p80
      %p82 = scmp.ne.s32.totalorder %s74, %s76
      %p83 = scmp.eq.s32.totalorder %s24, 2
      %p84 = por %p82, %p83
      %p85 = scmp.ne.s32.totalorder %s76, %s77
      %p86 = scmp.eq.s32.totalorder %s24, 0
      %p87 = por %p85, %p86
      %p88 = scmp.ne.s32.totalorder %s76, %s77
      %p89 = scmp.eq.s32.totalorder %s25, 2
      %p90 = por %p88, %p89
      %p92 = scmp.ne.s32.totalorder %s77, %s91
      %p93 = scmp.eq.s32.totalorder %s25, 0
      %p94 = por %p92, %p93
      %s96 = sadd.s32 %s95, 1
      %p99 = scmp.eq.s32.totalorder %s19, 2
      %p100 = scmp.ne.s32.totalorder %s95, %s97
      %p101 = scmp.eq.s32.totalorder %s19, 0
      %p102 = por %p100, %p101
      %p103 = scmp.ne.s32.totalorder %s95, %s97
      %p104 = scmp.eq.s32.totalorder %s24, 2
      %p105 = por %p103, %p104
      %p106 = scmp.ne.s32.totalorder %s97, %s98
      %p107 = scmp.eq.s32.totalorder %s24, 0
      %p108 = por %p106, %p107
      %p109 = scmp.ne.s32.totalorder %s97, %s98
      %p110 = scmp.eq.s32.totalorder %s25, 2
      %p111 = por %p109, %p110
      %p113 = scmp.ne.s32.totalorder %s98, %s112
      %p114 = scmp.eq.s32.totalorder %s25, 0
      %p115 = por %p113, %p114
      %s117 = sadd.s32 %s116, 1
      %p120 = scmp.eq.s32.totalorder %s19, 2
      %p121 = scmp.ne.s32.totalorder %s116, %s118
      %p122 = scmp.eq.s32.totalorder %s19, 0
      %p123 = por %p121, %p122
      %p124 = scmp.ne.s32.totalorder %s116, %s118
      %p125 = scmp.eq.s32.totalorder %s24, 2
      %p126 = por %p124, %p125
      %p127 = scmp.ne.s32.totalorder %s118, %s119
      %p128 = scmp.eq.s32.totalorder %s24, 0
      %p129 = por %p127, %p128
      %p130 = scmp.ne.s32.totalorder %s118, %s119
      %p131 = scmp.eq.s32.totalorder %s25, 2
      %p132 = por %p130, %p131
      %p134 = scmp.ne.s32.totalorder %s119, %s133
      %p135 = scmp.eq.s32.totalorder %s25, 0
      %p136 = por %p134, %p135
      %s138 = sadd.s32 %s137, 1
      %p141 = scmp.eq.s32.totalorder %s19, 2
      %p142 = scmp.ne.s32.totalorder %s137, %s139
      %p143 = scmp.eq.s32.totalorder %s19, 0
      %p144 = por %p142, %p143
      %p145 = scmp.ne.s32.totalorder %s137, %s139
      %p146 = scmp.eq.s32.totalorder %s24, 2
      %p147 = por %p145, %p146
      %p148 = scmp.ne.s32.totalorder %s139, %s140
      %p149 = scmp.eq.s32.totalorder %s24, 0
      %p150 = por %p148, %p149
      %p151 = scmp.ne.s32.totalorder %s139, %s140
      %p152 = scmp.eq.s32.totalorder %s25, 2
      %p153 = por %p151, %p152
      %p155 = scmp.ne.s32.totalorder %s140, %s154
      %p156 = scmp.eq.s32.totalorder %s25, 0
      %p157 = por %p155, %p156
      %s159 = sadd.s32 %s158, 1
      %p162 = scmp.eq.s32.totalorder %s19, 2
      %p163 = scmp.ne.s32.totalorder %s158, %s160
      %p164 = scmp.eq.s32.totalorder %s19, 0
      %p165 = por %p163, %p164
      %p166 = scmp.ne.s32.totalorder %s158, %s160
      %p167 = scmp.eq.s32.totalorder %s24, 2
      %p168 = por %p166, %p167
      %p169 = scmp.ne.s32.totalorder %s160, %s161
      %p170 = scmp.eq.s32.totalorder %s24, 0
      %p171 = por %p169, %p170
      %p172 = scmp.ne.s32.totalorder %s160, %s161
      %p173 = scmp.eq.s32.totalorder %s25, 2
      %p174 = por %p172, %p173
      %p176 = scmp.ne.s32.totalorder %s161, %s175
      %p177 = scmp.eq.s32.totalorder %s25, 0
      %p178 = por %p176, %p177
      %s180 = sadd.s32 %s179, 1
      %p183 = scmp.eq.s32.totalorder %s19, 2
      %p184 = scmp.ne.s32.totalorder %s179, %s181
      %p185 = scmp.eq.s32.totalorder %s19, 0
      %p186 = por %p184, %p185
      %p187 = scmp.ne.s32.totalorder %s179, %s181
      %p188 = scmp.eq.s32.totalorder %s24, 2
      %p189 = por %p187, %p188
      %p190 = scmp.ne.s32.totalorder %s181, %s182
      %p191 = scmp.eq.s32.totalorder %s24, 0
      %p192 = por %p190, %p191
      %p193 = scmp.ne.s32.totalorder %s181, %s182
      %p194 = scmp.eq.s32.totalorder %s25, 2
      %p195 = por %p193, %p194
      %p197 = scmp.ne.s32.totalorder %s182, %s196
      %p198 = scmp.eq.s32.totalorder %s25, 0
      %p199 = por %p197, %p198
      %s201 = sadd.s32 %s200, 1
      %p204 = scmp.eq.s32.totalorder %s19, 2
      %p205 = scmp.ne.s32.totalorder %s200, %s202
      %p206 = scmp.eq.s32.totalorder %s19, 0
      %p207 = por %p205, %p206
      %p208 = scmp.ne.s32.totalorder %s200, %s202
      %p209 = scmp.eq.s32.totalorder %s24, 2
      %p210 = por %p208, %p209
      %p211 = scmp.ne.s32.totalorder %s202, %s203
      %p212 = scmp.eq.s32.totalorder %s24, 0
      %p213 = por %p211, %p212
      %p214 = scmp.ne.s32.totalorder %s202, %s203
      %p215 = scmp.eq.s32.totalorder %s25, 2
      %p216 = por %p214, %p215
      %p218 = scmp.ne.s32.totalorder %s203, %s217
      %p219 = scmp.eq.s32.totalorder %s25, 0
      %p220 = por %p218, %p219
      %s221 = ssub.s32 %s19, %s26
      %p222 = scmp.eq.s32.totalorder %s221, 0
      %s224 = sadd.s32 %s223, 1
      %s225 = scalar_select %p222, %s223, %s224
      %p228 = pneg %p222
      %p229 = scmp.eq.s32.totalorder %s19, 2
      %p230 = por %p228, %p229
      %p231 = scmp.ne.s32.totalorder %s223, %s226
      %p232 = scmp.eq.s32.totalorder %s19, 0
      %p233 = por %p231, %p232
      %p234 = scmp.ne.s32.totalorder %s223, %s226
      %p235 = scmp.eq.s32.totalorder %s24, 2
      %p236 = por %p234, %p235
      %p237 = scmp.ne.s32.totalorder %s226, %s227
      %p238 = scmp.eq.s32.totalorder %s24, 0
      %p239 = por %p237, %p238
      %p240 = scmp.ne.s32.totalorder %s226, %s227
      %p241 = scmp.eq.s32.totalorder %s25, 2
      %p242 = por %p240, %p241
      %p244 = scmp.ne.s32.totalorder %s227, %s243
      %p245 = scmp.eq.s32.totalorder %s25, 0
      %p246 = por %p244, %p245
      %p247 = scmp.le.s32.totalorder 1, %s19
      %p248 = scmp.lt.s32.totalorder %s19, 4
      %p249 = pnand %p247, %p248
      %p250 = pneg %p249
      // Predicated region
      $region9: #{tpu_custom_call.1} parent=5 // pred_check
        _
      $region10: #{tpu_custom_call.1} parent=5 // pred_check_branch
        %252 = sbr.rel (%p249) target = $region12
      $region11: #{tpu_custom_call.1} parent=5 // pred_region
        %s253 = ssub.s32 %s19, 1
        // Predicated region
        $region13: #{tpu_custom_call.1} parent=11 // pred_check
          %p254 = pneg %p66
        $region14: #{tpu_custom_call.1} parent=11 // pred_check_branch
          %256 = sbr.rel (%p254) target = $region16
        $region15: #{tpu_custom_call.1} parent=11 // pred_region
          _
        $region16: #{tpu_custom_call.1} parent=11 // pred_fallthru
          _
        // Predicated region
        $region17: #{tpu_custom_call.1} parent=11 // pred_check
          %p257 = pneg %p87
        $region18: #{tpu_custom_call.1} parent=11 // pred_check_branch
          %259 = sbr.rel (%p257) target = $region20
        $region19: #{tpu_custom_call.1} parent=11 // pred_region
          _
        $region20: #{tpu_custom_call.1} parent=11 // pred_fallthru
          _
        // Predicated region
        $region21: #{tpu_custom_call.1} parent=11 // pred_check
          %p260 = pneg %p108
        $region22: #{tpu_custom_call.1} parent=11 // pred_check_branch
          %262 = sbr.rel (%p260) target = $region24
        $region23: #{tpu_custom_call.1} parent=11 // pred_region
          _
        $region24: #{tpu_custom_call.1} parent=11 // pred_fallthru
          _
        // Predicated region
        $region25: #{tpu_custom_call.1} parent=11 // pred_check
          %p263 = pneg %p129
        $region26: #{tpu_custom_call.1} parent=11 // pred_check_branch
          %265 = sbr.rel (%p263) target = $region28
        $region27: #{tpu_custom_call.1} parent=11 // pred_region
          _
        $region28: #{tpu_custom_call.1} parent=11 // pred_fallthru
          _
        // Predicated region
        $region29: #{tpu_custom_call.1} parent=11 // pred_check
          %p266 = pneg %p150
        $region30: #{tpu_custom_call.1} parent=11 // pred_check_branch
          %268 = sbr.rel (%p266) target = $region32
        $region31: #{tpu_custom_call.1} parent=11 // pred_region
          _
        $region32: #{tpu_custom_call.1} parent=11 // pred_fallthru
          _
        // Predicated region
        $region33: #{tpu_custom_call.1} parent=11 // pred_check
          %p269 = pneg %p171
        $region34: #{tpu_custom_call.1} parent=11 // pred_check_branch
          %271 = sbr.rel (%p269) target = $region36
        $region35: #{tpu_custom_call.1} parent=11 // pred_region
          _
        $region36: #{tpu_custom_call.1} parent=11 // pred_fallthru
          _
        // Predicated region
        $region37: #{tpu_custom_call.1} parent=11 // pred_check
          %p272 = pneg %p192
        $region38: #{tpu_custom_call.1} parent=11 // pred_check_branch
          %274 = sbr.rel (%p272) target = $region40
        $region39: #{tpu_custom_call.1} parent=11 // pred_region
          _
        $region40: #{tpu_custom_call.1} parent=11 // pred_fallthru
          _
        // Predicated region
        $region41: #{tpu_custom_call.1} parent=11 // pred_check
          %p275 = pneg %p213
        $region42: #{tpu_custom_call.1} parent=11 // pred_check_branch
          %277 = sbr.rel (%p275) target = $region44
        $region43: #{tpu_custom_call.1} parent=11 // pred_region
          _
        $region44: #{tpu_custom_call.1} parent=11 // pred_fallthru
          _
      $region12: #{tpu_custom_call.1} parent=5 // pred_fallthru
        _
      %p278 = scmp.lt.s32.totalorder %s19, 3
      // Predicated region
      $region45: #{tpu_custom_call.1} parent=5 // pred_check
        %p279 = pneg %p278
      $region46: #{tpu_custom_call.1} parent=5 // pred_check_branch
        %281 = sbr.rel (%p279) target = $region48
      $region47: #{tpu_custom_call.1} parent=5 // pred_region
        // Predicated region
        $region49: #{tpu_custom_call.1} parent=47 // pred_check
          %p282 = pneg %p39
        $region50: #{tpu_custom_call.1} parent=47 // pred_check_branch
          %284 = sbr.rel (%p282) target = $region52
        $region51: #{tpu_custom_call.1} parent=47 // pred_region
          %s285 = sand.u32 %s29, 1
          %s286 = scalar_lea.sflag [#allocation4], %s285
          %s287 = sand.u32 %s29, 1
          %s288 = smul.addr %s287, 8
          %s289 = scalar_lea.vmem [#allocation3], %s288
          %s291 = ssub.s32 128, 128
          %292 = vsyncadd %s286, %s291
          %s293 = smul.addr %s19, 2
          %s294 = smul.addr %s293, 64
          %s295 = scalar_lea.hbm %s0, %s294
          %s297 = sshll.u32 %s289, 4
          %s298 = int_to_ptr.vmem [resolvable:$true] %s297
          %300 = dma.hbm_to_vmem [thread:$0]  %s295, 128, %s298, %s286
        $region52: #{tpu_custom_call.1} parent=47 // pred_fallthru
          _
      $region48: #{tpu_custom_call.1} parent=5 // pred_fallthru
        _
      %p301 = scmp.le.s32.totalorder 1, %s19
      %p302 = scmp.lt.s32.totalorder %s19, 4
      %p303 = pnand %p301, %p302
      %p304 = pneg %p303
      // Predicated region
      $region53: #{tpu_custom_call.1} parent=5 // pred_check
        _
      $region54: #{tpu_custom_call.1} parent=5 // pred_check_branch
        %306 = sbr.rel (%p303) target = $region56
      $region55: #{tpu_custom_call.1} parent=5 // pred_region
        %s307 = ssub.s32 %s19, 1
        %s308 = sand.u32 %s32, 1
        %s309 = scalar_lea.sflag [#allocation4], %s308
        %s310 = sand.u32 %s32, 1
        %s311 = smul.addr %s310, 8
        %s312 = scalar_lea.vmem [#allocation3], %s311
        // Predicated region
        $region57: #{tpu_custom_call.1} parent=55 // pred_check
          %p313 = pneg %p45
        $region58: #{tpu_custom_call.1} parent=55 // pred_check_branch
          %315 = sbr.rel (%p313) target = $region60
        $region59: #{tpu_custom_call.1} parent=55 // pred_region
          %316 = dma.done %s309, 128
        $region60: #{tpu_custom_call.1} parent=55 // pred_fallthru
          _
        %s317 = sand.u32 %s32, 1
        %s318 = scalar_lea.sflag [#allocation4], %s317
        %s319 = sand.u32 %s32, 1
        %s320 = smul.addr %s319, 8
        %s321 = scalar_lea.vmem [#allocation3], %s320
        %p322 = pneg %p45
        %p323 = pneg %p42
        %p324 = pneg %p66
        %p325 = pneg %p63
        %p326 = pneg %p87
        %p327 = pneg %p84
        %p328 = pneg %p108
        %p329 = pneg %p105
        %p330 = pneg %p129
        %p331 = pneg %p126
        %p332 = pneg %p150
        %p333 = pneg %p147
        %p334 = pneg %p171
        %p335 = pneg %p168
        %p336 = pneg %p192
        %p337 = pneg %p189
        %p338 = pneg %p213
        %p339 = pneg %p210
        %p340 = pneg %p239
        %p341 = pneg %p236
        %p342 = scmp.lt.s32.totalorder %s24, 2
        %s343 = scalar_select %p342, %s24, 2
        %s344 = smul.addr %s343, 8
        %s345 = scalar_lea.vmem %s9, %s344
        %p346 = scmp.lt.s32.totalorder %s24, 2
        %s347 = scalar_select %p346, %s24, 2
        %s348 = smul.addr %s347, 8
        %s349 = scalar_lea.vmem %s9, %s348
        %v351 = vld [vmem:[%s312] sm:$0xff]
        %v352 = vld [vmem:[%s1] sm:$0xf]
        %v353 = vld [vmem:[%s1 + $0x4] sm:$0xf]
        %v354 = vld [vmem:[%s1 + $0x8] sm:$0xf]
        %v355 = vld [vmem:[%s1 + $0xc] sm:$0xf]
        %v356 = vld [vmem:[%s1 + $0x10] sm:$0xf]
        %v357 = vld [vmem:[%s1 + $0x14] sm:$0xf]
        %v358 = vld [vmem:[%s1 + $0x18] sm:$0xf]
        %v359 = vld [vmem:[%s1 + $0x1c] sm:$0xf]
        %v360 = vld [vmem:[%s1 + $0x20] sm:$0xf]
        %v361 = vld [vmem:[%s1 + $0x24] sm:$0xf]
        %v362 = vld [vmem:[%s1 + $0x28] sm:$0xf]
        %v363 = vld [vmem:[%s1 + $0x2c] sm:$0xf]
        %v364 = vld [vmem:[%s1 + $0x30] sm:$0xf]
        %v365 = vld [vmem:[%s1 + $0x34] sm:$0xf]
        %v366 = vld [vmem:[%s1 + $0x38] sm:$0xf]
        %v367 = vld [vmem:[%s1 + $0x3c] sm:$0xf]
        %v368 = vld [vmem:[%s1 + $0x40] sm:$0xf]
        %v369 = vld [vmem:[%s1 + $0x44] sm:$0xf]
        %v370 = vld [vmem:[%s1 + $0x48] sm:$0xf]
        %v371 = vld [vmem:[%s1 + $0x4c] sm:$0xf]
        %v372 = vld [vmem:[%s1 + $0x50] sm:$0xf]
        %v373 = vld [vmem:[%s1 + $0x54] sm:$0xf]
        %v374 = vld [vmem:[%s1 + $0x58] sm:$0xf]
        %v375 = vld [vmem:[%s1 + $0x5c] sm:$0xf]
        %v376 = vld [vmem:[%s1 + $0x60] sm:$0xf]
        %v377 = vld [vmem:[%s1 + $0x64] sm:$0xf]
        %v378 = vld [vmem:[%s1 + $0x68] sm:$0xf]
        %v379 = vld [vmem:[%s1 + $0x6c] sm:$0xf]
        %v380 = vld [vmem:[%s1 + $0x70] sm:$0xf]
        %v381 = vld [vmem:[%s1 + $0x74] sm:$0xf]
        %v382 = vld [vmem:[%s1 + $0x78] sm:$0xf]
        %v383 = vld [vmem:[%s1 + $0x7c] sm:$0xf]
        %v384 = vld [vmem:[%s2] sm:$0x1]
        %v386 = vlaneseq
        %v387 = vshrl.u32 %v386, 7
        %v388 = vsub.s32 0, %v387
        %v389 = vrot.slane %v384, %v388
        %v392 = vunpack.c.l.b16 %v351
        %v393 = vunpack.c.h.b16 %v351
        %v394 = vpack.c.b16 %v392, %v392
        %v395 = vpack.c.b16 %v393, %v393
        %v430 = vunpack.c.l.b16 %v352
        %v431 = vunpack.c.l.b16 %v353
        %v432 = vunpack.c.l.b16 %v354
        %v433 = vunpack.c.l.b16 %v355
        %v434 = vunpack.c.l.b16 %v356
        %v435 = vunpack.c.l.b16 %v357
        %v436 = vunpack.c.l.b16 %v358
        %v437 = vunpack.c.l.b16 %v359
        %v438 = vunpack.c.l.b16 %v360
        %v439 = vunpack.c.l.b16 %v361
        %v440 = vunpack.c.l.b16 %v362
        %v441 = vunpack.c.l.b16 %v363
        %v442 = vunpack.c.l.b16 %v364
        %v443 = vunpack.c.l.b16 %v365
        %v444 = vunpack.c.l.b16 %v366
        %v445 = vunpack.c.l.b16 %v367
        %v446 = vunpack.c.l.b16 %v368
        %v447 = vunpack.c.l.b16 %v369
        %v448 = vunpack.c.l.b16 %v370
        %v449 = vunpack.c.l.b16 %v371
        %v450 = vunpack.c.l.b16 %v372
        %v451 = vunpack.c.l.b16 %v373
        %v452 = vunpack.c.l.b16 %v374
        %v453 = vunpack.c.l.b16 %v375
        %v454 = vunpack.c.l.b16 %v376
        %v455 = vunpack.c.l.b16 %v377
        %v456 = vunpack.c.l.b16 %v378
        %v457 = vunpack.c.l.b16 %v379
        %v458 = vunpack.c.l.b16 %v380
        %v459 = vunpack.c.l.b16 %v381
        %v460 = vunpack.c.l.b16 %v382
        %v461 = vunpack.c.l.b16 %v383
        %v462 = vpack.c.b16 %v431, %v430
        %v463 = vpack.c.b16 %v433, %v432
        %v464 = vpack.c.b16 %v435, %v434
        %v465 = vpack.c.b16 %v437, %v436
        %v466 = vpack.c.b16 %v439, %v438
        %v467 = vpack.c.b16 %v441, %v440
        %v468 = vpack.c.b16 %v443, %v442
        %v469 = vpack.c.b16 %v445, %v444
        %v470 = vpack.c.b16 %v447, %v446
        %v471 = vpack.c.b16 %v449, %v448
        %v472 = vpack.c.b16 %v451, %v450
        %v473 = vpack.c.b16 %v453, %v452
        %v474 = vpack.c.b16 %v455, %v454
        %v475 = vpack.c.b16 %v457, %v456
        %v476 = vpack.c.b16 %v459, %v458
        %v477 = vpack.c.b16 %v461, %v460
        %494 = vmatprep.subr.bf16.mxu0 0
        %495 = vmatpush1.bf16.msra.mxu0 %v462
        %496 = vmatprep.subr.bf16.mxu0 0
        %497 = vmatpush1.bf16.msra.mxu0 %v463
        %498 = vmatprep.subr.bf16.mxu0 0
        %499 = vmatpush1.bf16.msra.mxu0 %v464
        %500 = vmatprep.subr.bf16.mxu0 0
        %501 = vmatpush1.bf16.msra.mxu0 %v465
        %502 = vmatprep.subr.bf16.mxu0 0
        %503 = vmatpush1.bf16.msra.mxu0 %v466
        %504 = vmatprep.subr.bf16.mxu0 0
        %505 = vmatpush1.bf16.msra.mxu0 %v467
        %506 = vmatprep.subr.bf16.mxu0 0
        %507 = vmatpush1.bf16.msra.mxu0 %v468
        %508 = vmatprep.subr.bf16.mxu0 0
        %509 = vmatpush1.bf16.msra.mxu0 %v469
        %510 = vmatprep.subr.bf16.mxu0 0
        %511 = vmatpush1.bf16.msra.mxu0 %v470
        %512 = vmatprep.subr.bf16.mxu0 0
        %513 = vmatpush1.bf16.msra.mxu0 %v471
        %514 = vmatprep.subr.bf16.mxu0 0
        %515 = vmatpush1.bf16.msra.mxu0 %v472
        %516 = vmatprep.subr.bf16.mxu0 0
        %517 = vmatpush1.bf16.msra.mxu0 %v473
        %518 = vmatprep.subr.bf16.mxu0 0
        %519 = vmatpush1.bf16.msra.mxu0 %v474
        %520 = vmatprep.subr.bf16.mxu0 0
        %521 = vmatpush1.bf16.msra.mxu0 %v475
        %522 = vmatprep.subr.bf16.mxu0 0
        %523 = vmatpush1.bf16.msra.mxu0 %v476
        %524 = vmatprep.subr.bf16.mxu0 0
        %525 = vmatpush1.bf16.msra.mxu0 %v477
        %526 = vmatprep.mubr.bf16.mxu0 %v395
        %527 = vmatmul.mubr.bf16.gmra.mrb[0].mxu0 %v394
        %v528 = vpop.f32.mrb[0].mxu0
        %v529 = vadd.f32 %v389, %v528
        %v530 = vpop.f32.mrb[0].mxu0
        %v531 = vpop.f32.mrb[0].mxu0
        %v532 = vpop.f32.mrb[0].mxu0
        %533 = vdwg.mxu0
        %vm534 = vcmp.gt.f32.partialorder %v529, 0.0
        %v535 = vmin.f32 %v529, 0.0
        %v536 = vmul.f32 %v535, 1.442695
        %v537 = vpow.pop %v536
        %v538 = vsub.f32 %v537, 1.0
        %v539 = vmul.f32 %v538, 1.6732632
        %v540 = vsel %vm534, %v529, %v539
        %v541 = vmul.f32 %v540, 1.050701
        %v542 = vpack.c.bf16 %v541, %v541
        %v543 = vld [vmem:[%s3] sm:$0xf]
        %v544 = vld [vmem:[%s3 + $0x4] sm:$0xf]
        %v545 = vld [vmem:[%s3 + $0x8] sm:$0xf]
        %v546 = vld [vmem:[%s3 + $0xc] sm:$0xf]
        %v547 = vld [vmem:[%s3 + $0x10] sm:$0xf]
        %v548 = vld [vmem:[%s3 + $0x14] sm:$0xf]
        %v549 = vld [vmem:[%s3 + $0x18] sm:$0xf]
        %v550 = vld [vmem:[%s3 + $0x1c] sm:$0xf]
        %v551 = vld [vmem:[%s3 + $0x20] sm:$0xf]
        %v552 = vld [vmem:[%s3 + $0x24] sm:$0xf]
        %v553 = vld [vmem:[%s3 + $0x28] sm:$0xf]
        %v554 = vld [vmem:[%s3 + $0x2c] sm:$0xf]
        %v555 = vld [vmem:[%s3 + $0x30] sm:$0xf]
        %v556 = vld [vmem:[%s3 + $0x34] sm:$0xf]
        %v557 = vld [vmem:[%s3 + $0x38] sm:$0xf]
        %v558 = vld [vmem:[%s3 + $0x3c] sm:$0xf]
        %v559 = vld [vmem:[%s4] sm:$0x1]
        %v561 = vlaneseq
        %v562 = vshrl.u32 %v561, 7
        %v563 = vsub.s32 0, %v562
        %v564 = vrot.slane %v559, %v563
        %v582 = vunpack.c.l.b16 %v543
        %v583 = vunpack.c.l.b16 %v544
        %v584 = vunpack.c.l.b16 %v545
        %v585 = vunpack.c.l.b16 %v546
        %v586 = vunpack.c.l.b16 %v547
        %v587 = vunpack.c.l.b16 %v548
        %v588 = vunpack.c.l.b16 %v549
        %v589 = vunpack.c.l.b16 %v550
        %v590 = vunpack.c.l.b16 %v551
        %v591 = vunpack.c.l.b16 %v552
        %v592 = vunpack.c.l.b16 %v553
        %v593 = vunpack.c.l.b16 %v554
        %v594 = vunpack.c.l.b16 %v555
        %v595 = vunpack.c.l.b16 %v556
        %v596 = vunpack.c.l.b16 %v557
        %v597 = vunpack.c.l.b16 %v558
        %v598 = vpack.c.b16 %v583, %v582
        %v599 = vpack.c.b16 %v585, %v584
        %v600 = vpack.c.b16 %v587, %v586
        %v601 = vpack.c.b16 %v589, %v588
        %v602 = vpack.c.b16 %v591, %v590
        %v603 = vpack.c.b16 %v593, %v592
        %v604 = vpack.c.b16 %v595, %v594
        %v605 = vpack.c.b16 %v597, %v596
        %614 = vmatprep.subr.bf16.mxu0 0
        %615 = vmatpush1.bf16.msra.mxu0 %v598
        %616 = vmatprep.subr.bf16.mxu0 0
        %617 = vmatpush1.bf16.msra.mxu0 %v599
        %618 = vmatprep.subr.bf16.mxu0 0
        %619 = vmatpush1.bf16.msra.mxu0 %v600
        %620 = vmatprep.subr.bf16.mxu0 0
        %621 = vmatpush1.bf16.msra.mxu0 %v601
        %622 = vmatprep.subr.bf16.mxu0 0
        %623 = vmatpush1.bf16.msra.mxu0 %v602
        %624 = vmatprep.subr.bf16.mxu0 0
        %625 = vmatpush1.bf16.msra.mxu0 %v603
        %626 = vmatprep.subr.bf16.mxu0 0
        %627 = vmatpush1.bf16.msra.mxu0 %v604
        %628 = vmatprep.subr.bf16.mxu0 0
        %629 = vmatpush1.bf16.msra.mxu0 %v605
        %630 = vmatprep.subr.bf16.mxu0 0
        %631 = vmatpush1.bf16.msra.mxu0 0
        %632 = vmatprep.subr.bf16.mxu0 0
        %633 = vmatpush1.bf16.msra.mxu0 0
        %634 = vmatprep.subr.bf16.mxu0 0
        %635 = vmatpush1.bf16.msra.mxu0 0
        %636 = vmatprep.subr.bf16.mxu0 0
        %637 = vmatpush1.bf16.msra.mxu0 0
        %638 = vmatprep.subr.bf16.mxu0 0
        %639 = vmatpush1.bf16.msra.mxu0 0
        %640 = vmatprep.subr.bf16.mxu0 0
        %641 = vmatpush1.bf16.msra.mxu0 0
        %642 = vmatprep.subr.bf16.mxu0 0
        %643 = vmatpush1.bf16.msra.mxu0 0
        %644 = vmatprep.subr.bf16.mxu0 0
        %645 = vmatpush1.bf16.msra.mxu0 0
        %646 = vmatprep.mubr.bf16.mxu0 0
        %647 = vmatmul.mubr.bf16.gmra.mrb[0].mxu0 %v542
        %v648 = vpop.f32.mrb[0].mxu0
        %v649 = vadd.f32 %v564, %v648
        %v650 = vpop.f32.mrb[0].mxu0
        %v651 = vpop.f32.mrb[0].mxu0
        %v652 = vpop.f32.mrb[0].mxu0
        %653 = vdwg.mxu0
        %vm654 = vcmp.gt.f32.partialorder %v649, 0.0
        %v655 = vmin.f32 %v649, 0.0
        %v656 = vmul.f32 %v655, 1.442695
        %v657 = vpow.pop %v656
        %v658 = vsub.f32 %v657, 1.0
        %v659 = vmul.f32 %v658, 1.6732632
        %v660 = vsel %vm654, %v649, %v659
        %v661 = vmul.f32 %v660, 1.050701
        %v662 = vpack.c.bf16 %v661, %v661
        %v663 = vld [vmem:[%s5] sm:$0xf]
        %v664 = vld [vmem:[%s5 + $0x4] sm:$0xf]
        %v665 = vld [vmem:[%s5 + $0x8] sm:$0xf]
        %v666 = vld [vmem:[%s5 + $0xc] sm:$0xf]
        %v667 = vld [vmem:[%s5 + $0x10] sm:$0xf]
        %v668 = vld [vmem:[%s5 + $0x14] sm:$0xf]
        %v669 = vld [vmem:[%s5 + $0x18] sm:$0xf]
        %v670 = vld [vmem:[%s5 + $0x1c] sm:$0xf]
        %v671 = vld [vmem:[%s6] sm:$0x1]
        %v673 = vlaneseq
        %v674 = vshrl.u32 %v673, 7
        %v675 = vsub.s32 0, %v674
        %v676 = vrot.slane %v671, %v675
        %v686 = vunpack.c.l.b16 %v663
        %v687 = vunpack.c.l.b16 %v664
        %v688 = vunpack.c.l.b16 %v665
        %v689 = vunpack.c.l.b16 %v666
        %v690 = vunpack.c.l.b16 %v667
        %v691 = vunpack.c.l.b16 %v668
        %v692 = vunpack.c.l.b16 %v669
        %v693 = vunpack.c.l.b16 %v670
        %v694 = vpack.c.b16 %v687, %v686
        %v695 = vpack.c.b16 %v689, %v688
        %v696 = vpack.c.b16 %v691, %v690
        %v697 = vpack.c.b16 %v693, %v692
        %vm702 = vcmask 523264
        %v704 = vsel %vm702, %v662, 0
        %706 = vmatprep.subr.bf16.mxu0 0
        %707 = vmatpush1.bf16.msra.mxu0 %v694
        %708 = vmatprep.subr.bf16.mxu0 0
        %709 = vmatpush1.bf16.msra.mxu0 %v695
        %710 = vmatprep.subr.bf16.mxu0 0
        %711 = vmatpush1.bf16.msra.mxu0 %v696
        %712 = vmatprep.subr.bf16.mxu0 0
        %713 = vmatpush1.bf16.msra.mxu0 %v697
        %714 = vmatprep.subr.bf16.mxu0 0
        %715 = vmatpush1.bf16.msra.mxu0 0
        %716 = vmatprep.subr.bf16.mxu0 0
        %717 = vmatpush1.bf16.msra.mxu0 0
        %718 = vmatprep.subr.bf16.mxu0 0
        %719 = vmatpush1.bf16.msra.mxu0 0
        %720 = vmatprep.subr.bf16.mxu0 0
        %721 = vmatpush1.bf16.msra.mxu0 0
        %722 = vmatprep.subr.bf16.mxu0 0
        %723 = vmatpush1.bf16.msra.mxu0 0
        %724 = vmatprep.subr.bf16.mxu0 0
        %725 = vmatpush1.bf16.msra.mxu0 0
        %726 = vmatprep.subr.bf16.mxu0 0
        %727 = vmatpush1.bf16.msra.mxu0 0
        %728 = vmatprep.subr.bf16.mxu0 0
        %729 = vmatpush1.bf16.msra.mxu0 0
        %730 = vmatprep.subr.bf16.mxu0 0
        %731 = vmatpush1.bf16.msra.mxu0 0
        %732 = vmatprep.subr.bf16.mxu0 0
        %733 = vmatpush1.bf16.msra.mxu0 0
        %734 = vmatprep.subr.bf16.mxu0 0
        %735 = vmatpush1.bf16.msra.mxu0 0
        %736 = vmatprep.subr.bf16.mxu0 0
        %737 = vmatpush1.bf16.msra.mxu0 0
        %738 = vmatprep.mubr.bf16.mxu0 0
        %739 = vmatmul.mubr.bf16.gmra.mrb[0].mxu0 %v704
        %v740 = vpop.f32.mrb[0].mxu0
        %v741 = vadd.f32 %v676, %v740
        %v742 = vpop.f32.mrb[0].mxu0
        %v743 = vpop.f32.mrb[0].mxu0
        %v744 = vpop.f32.mrb[0].mxu0
        %745 = vdwg.mxu0
        %vm746 = vcmp.gt.f32.partialorder %v741, 0.0
        %v747 = vmin.f32 %v741, 0.0
        %v748 = vmul.f32 %v747, 1.442695
        %v749 = vpow.pop %v748
        %v750 = vsub.f32 %v749, 1.0
        %v751 = vmul.f32 %v750, 1.6732632
        %v752 = vsel %vm746, %v741, %v751
        %v753 = vmul.f32 %v752, 1.050701
        %v754 = vld [vmem:[%s7] sm:$0x1]
        %v756 = vlaneseq
        %v757 = vshrl.u32 %v756, 7
        %v758 = vsub.s32 0, %v757
        %v759 = vrot.slane %v754, %v758
        %v761 = vmul.f32 %v753, %v759
        %vm762 = vcmask 261120
        %v763 = vsel %vm762, %v761, 0.0
        %764 = vadd.xlane.f32.xlu0 %v763
        %v765 = vpop.xlane.xlu0 %764
        %s766 = sld [smem:[#allocation2]]
        %v767 = vstv %s766
        %v768 = vadd.f32 %v765, %v767
        %vm769 = vcmp.gt.f32.partialorder %v768, 0.0
        %v770 = vmin.f32 %v768, 0.0
        %v771 = vmul.f32 %v770, 1.442695
        %v772 = vpow.pop %v771
        %v773 = vsub.f32 %v772, 1.0
        %v774 = vmul.f32 %v773, 1.6732632
        %v775 = vsel %vm769, %v768, %v774
        %v776 = vmul.f32 %v775, 1.050701
        %vm777 = vcmask 7168
        %778 = vst.msk [vmem:[%s349] sm:$0xff] %vm777, %v776
        %p779 = scmp.lt.s32.totalorder %s24, 2
        %s780 = scalar_select %p779, %s24, 2
        %s781 = smul.addr %s780, 8
        %s782 = scalar_lea.vmem %s9, %s781
        // Predicated region
        $region61: #{tpu_custom_call.1} parent=55 // pred_check
          %p783 = pneg %p236
        $region62: #{tpu_custom_call.1} parent=55 // pred_check_branch
          %785 = sbr.rel (%p783) target = $region64
        $region63: #{tpu_custom_call.1} parent=55 // pred_region
          _
        $region64: #{tpu_custom_call.1} parent=55 // pred_fallthru
          _
      $region56: #{tpu_custom_call.1} parent=5 // pred_fallthru
        _
      %p786 = scmp.le.s32.totalorder 2, %s19
      // Predicated region
      $region65: #{tpu_custom_call.1} parent=5 // pred_check
        %p787 = pneg %p786
      $region66: #{tpu_custom_call.1} parent=5 // pred_check_branch
        %789 = sbr.rel (%p787) target = $region68
      $region67: #{tpu_custom_call.1} parent=5 // pred_region
        %s790 = ssub.s32 %s19, 2
        // Predicated region
        $region69: #{tpu_custom_call.1} parent=67 // pred_check
          %p791 = pneg %p242
        $region70: #{tpu_custom_call.1} parent=67 // pred_check_branch
          %793 = sbr.rel (%p791) target = $region72
        $region71: #{tpu_custom_call.1} parent=67 // pred_region
          %p794 = scmp.lt.s32.totalorder %s25, 2
          %s795 = scalar_select %p794, %s25, 2
          %s796 = smul.addr %s795, 8
          %s797 = scalar_lea.vmem %s9, %s796
        $region72: #{tpu_custom_call.1} parent=67 // pred_fallthru
          _
      $region68: #{tpu_custom_call.1} parent=5 // pred_fallthru
        _
    $region6: #{tpu_custom_call.1} parent=1 // loop_footer
      %s23 = sadd.s32 1, %s19
    $region7: #{tpu_custom_call.1} parent=1 // loop_footer_branch
      %18 = sbr.rel target = $region3
    $region8: #{tpu_custom_call.1} parent=1 // loop_exit
      _
    %798 = vsyncpa [#allocation4], 1
    %s799 = scalar_lea.sflag [#allocation4], 1
    %800 = vsyncpa %s799, 1

</llo_original>
